<compile_context>
chip_gen: v5e
topology: v5e:2x2
jax: 0.10.0
libtpu: 0.0.40
codegen_flags: <defaults>
</compile_context>

<pallas_src>
import jax
import jax.numpy as jnp
from jax.experimental import pallas as pl
from jax.experimental.pallas import tpu as pltpu

_LANE = 128


def _identity_kernel(x_ref, o_ref):
    # SigmoidLayer.forward is `return x` — elementwise passthrough of the tile.
    o_ref[...] = x_ref[...]


def _sublane_pack(itemsize: int) -> int:
    # Native second-minor packing: 8 rows for 32-bit, 16 for 16-bit, 32 for 8-bit.
    return 8 * max(1, 4 // itemsize)


def sigmoid_layer_forward(x, *, tile_bytes=2 * 1024 * 1024, vmem_limit_bytes=None):
    """Identity forward pass of SigmoidLayer, run through a Pallas copy kernel."""
    orig_shape = x.shape
    n = int(x.size)
    if n == 0:
        return x

    itemsize = x.dtype.itemsize
    sublane = _sublane_pack(itemsize)
    flat = x.reshape(-1)

    if n % _LANE == 0:
        # Lane-dense slab: full-width (multiple-of-128) rows, 1D grid over rows.
        cols = next(c for c in (1024, 512, 256, _LANE) if n % c == 0)
        rows = n // cols
        x2 = flat.reshape(rows, cols)
        max_rows = max(sublane, (tile_bytes // (cols * itemsize)) // sublane * sublane)
        tile_r = rows if rows <= max_rows else max_rows   # full-extent or 8/16/32-multiple
        block = (tile_r, cols)
        grid = (pl.cdiv(rows, tile_r),)
        index_map = lambda i: (i, 0)
    else:
        # Element count not 128-aligned: single-row slab, 128-multiple chunks.
        # The partial edge block is masked by Pallas — still no pad / slice.
        rows, cols = 1, n
        x2 = flat.reshape(rows, cols)
        cap = max(_LANE, (tile_bytes // itemsize) // _LANE * _LANE)
        tile_c = cols if cols <= cap else cap
        block = (1, tile_c)
        grid = (pl.cdiv(cols, tile_c),)
        index_map = lambda i: (0, i)

    tile_nbytes = block[0] * block[1] * itemsize
    if vmem_limit_bytes is None:
        # in + out, double buffered, plus headroom; keep under v7x's 64 MiB/TC.
        vmem_limit_bytes = min(48 << 20, max(16 << 20, 4 * tile_nbytes + (8 << 20)))

    out2 = pl.pallas_call(
        _identity_kernel,
        out_shape=jax.ShapeDtypeStruct(x2.shape, x2.dtype),
        grid=grid,
        in_specs=[pl.BlockSpec(block, index_map)],
        out_specs=pl.BlockSpec(block, index_map),
        input_output_aliases={0: 0},
        compiler_params=pltpu.CompilerParams(
            dimension_semantics=("parallel",),
            vmem_limit_bytes=int(vmem_limit_bytes),
        ),
    )(x2)

    return out2.reshape(orig_shape)


if __name__ == "__main__":
    key = jax.random.PRNGKey(0)

    # output_size / feature_size are unused by the module (no parameters);
    # kept only for parity with the PyTorch constructor signature.
    output_size, feature_size = 32, 16

    # Main example: small NCHW feature map.
    x = jax.random.normal(key, (2, 4, 16, 16), dtype=jnp.float32)
    y = jax.block_until_ready(sigmoid_layer_forward(x))
    assert y.shape == x.shape and y.dtype == x.dtype
    assert bool(jnp.all(y == x))

    # Small extra checks: multi-tile grid (bf16, tiny forced tile budget) and a
    # non-128-aligned element count (masked edge-block path).
    k1, k2 = jax.random.split(key)
    xb = jax.random.normal(k1, (64, 1024), dtype=jnp.bfloat16)
    yb = jax.block_until_ready(sigmoid_layer_forward(xb, tile_bytes=64 * 1024))
    assert yb.shape == xb.shape and yb.dtype == xb.dtype
    assert bool(jnp.all(yb == xb))

    xo = jax.random.normal(k2, (3, 5, 7), dtype=jnp.float32)
    yo = jax.block_until_ready(sigmoid_layer_forward(xo))
    assert yo.shape == xo.shape and yo.dtype == xo.dtype
    assert bool(jnp.all(yo == xo))

    print("KERNEL_OK")
</pallas_src>

<mosaic_0001>
module attributes {stable_mosaic.version = 11 : i64} {
  func.func @_identity_kernel(%arg0: i32, %arg1: memref<2x1024xf32, #tpu.memory_space<vmem>>, %arg2: memref<2x1024xf32, #tpu.memory_space<vmem>>) attributes {dimension_semantics = [#tpu.dimension_semantics<parallel>], iteration_bounds = array<i64: 1>, scalar_prefetch = 0 : i64, scratch_operands = 0 : i64, tpu.core_type = #tpu.core_type<tc>, window_params = [{transform_indices = @transform_0, window_bounds = array<i64: 2, 1024>}, {transform_indices = @transform_1, window_bounds = array<i64: 2, 1024>}]} {
    %c0 = arith.constant 0 : index
    %c0_0 = arith.constant 0 : index
    %0 = vector.load %arg1[%c0, %c0_0] : memref<2x1024xf32, #tpu.memory_space<vmem>>, vector<2x1024xf32>
    %c0_1 = arith.constant 0 : index
    %c0_2 = arith.constant 0 : index
    %1 = vector.load %arg2[%c0_1, %c0_2] : memref<2x1024xf32, #tpu.memory_space<vmem>>, vector<2x1024xf32>
    tpu.vector_store %arg2[%c0_1, %c0_2], %0 {strides = array<i32>} : memref<2x1024xf32, #tpu.memory_space<vmem>>, vector<2x1024xf32>,
    return
  }
  func.func @transform_0(%arg0: i32) -> (i32, i32) {
    %c0_i32 = arith.constant 0 : i32
    %c0_i32_0 = arith.constant 0 : i32
    return %arg0, %c0_i32 : i32, i32
  }
  func.func @transform_1(%arg0: i32) -> (i32, i32) {
    %c0_i32 = arith.constant 0 : i32
    %c0_i32_0 = arith.constant 0 : i32
    return %arg0, %c0_i32 : i32, i32
  }
}

</mosaic_0001>

<llo_original>
// kernel: tpu_custom_call.1
$region0: #{tpu_custom_call.1}
  #allocation0 [shape = 'u32[]', space=smem, size = 0x4, offset = 0x4, fixed_abs, tag = 'smem constant byte address 0x4 - core index']
  #allocation1 [shape = 'u32[72,128]{1,0:T(1,128)}', space=vmem, size = 0x9000, scoped, tag = 'internal scratch']
  %s0 = inlined_call_operand.hbm [shape: f32[2,1024], index: 0, kind: input, shape index: {}, may-alias: {0,1}]
  %s1 = inlined_call_operand.hbm [shape: f32[2,1024], index: 1, kind: output, shape index: {}, may-alias: {0,1}]
  %s2 = sld [smem:[#allocation0]]
  $region18: #{tpu_custom_call.1} parent=0
    _
  %s4 = ssub.s32 1, %s2
  %s5 = scalar_select 0, %s4, %s2
  $region1: #{tpu_custom_call.1} parent=0
    #allocation2 [shape = 'u8[8192]{0}', space=vmem, size = 0x2000, scoped, tag = 'input window, operand 0, single buffered']
    #allocation3 [shape = 's32[1]{0}', space=sflag, size = 0x4, scoped, tag = 'scoped memory for tpu_custom_call.1']
    #allocation4 [shape = 's32[1]{0}', space=sflag, size = 0x4, scoped, tag = 'scoped memory for tpu_custom_call.1']
    #allocation5 [shape = 'u8[8192]{0}', space=vmem, size = 0x2000, scoped, tag = 'output window, operand 0, single buffered']
    %6 = vsyncpa [#allocation3], 0
    %7 = vsyncpa [#allocation4], 0
    // Predicated region
    $region2: #{tpu_custom_call.1} parent=1 // pred_check
      _
    $region3: #{tpu_custom_call.1} parent=1 // pred_check_branch
      %9 = sbr.rel (0) target = $region5
    $region4: #{tpu_custom_call.1} parent=1 // pred_region
      %11 = vsyncadd [#allocation3], 0
      %s13 = sshll.u32 %s0, 4
      %s14 = int_to_ptr.hbm [resolvable:$true] %s13
      %s15 = sshll.u32 [#allocation2], 4
      %s16 = int_to_ptr.vmem [resolvable:$true] %s15
      %18 = dma.hbm_to_vmem [thread:$0]  %s14, 256, %s16, [#allocation3]
    $region5: #{tpu_custom_call.1} parent=1 // pred_fallthru
      _
    // Predicated region
    $region6: #{tpu_custom_call.1} parent=1 // pred_check
      _
    $region7: #{tpu_custom_call.1} parent=1 // pred_check_branch
      %20 = sbr.rel (0) target = $region9
    $region8: #{tpu_custom_call.1} parent=1 // pred_region
      %22 = dma.done [#allocation3], 256
    $region9: #{tpu_custom_call.1} parent=1 // pred_fallthru
      _
    %v23 = vld [vmem:[#allocation2] sm:$0xff]
    %v24 = vld [vmem:[#allocation2 + $0x8] sm:$0xff]
    %25 = vst [vmem:[#allocation5] sm:$0xff] %v23
    %26 = vst [vmem:[#allocation5 + $0x8] sm:$0xff] %v24
    // Predicated region
    $region10: #{tpu_custom_call.1} parent=1 // pred_check
      _
    $region11: #{tpu_custom_call.1} parent=1 // pred_check_branch
      %28 = sbr.rel (0) target = $region13
    $region12: #{tpu_custom_call.1} parent=1 // pred_region
      %30 = vsyncadd [#allocation4], 0
      %s32 = sshll.u32 [#allocation5], 4
      %s33 = int_to_ptr.vmem [resolvable:$true] %s32
      %s34 = sshll.u32 %s1, 4
      %s35 = int_to_ptr.hbm [resolvable:$true] %s34
      %37 = dma.vmem_to_hbm [thread:$0]  %s33, 256, %s35, [#allocation4]
    $region13: #{tpu_custom_call.1} parent=1 // pred_fallthru
      _
    // Predicated region
    $region14: #{tpu_custom_call.1} parent=1 // pred_check
      _
    $region15: #{tpu_custom_call.1} parent=1 // pred_check_branch
      %39 = sbr.rel (0) target = $region17
    $region16: #{tpu_custom_call.1} parent=1 // pred_region
      %41 = dma.done [#allocation4], 256
    $region17: #{tpu_custom_call.1} parent=1 // pred_fallthru
      _
    %42 = vsyncpa [#allocation3], 1
    %43 = vsyncpa [#allocation4], 1

</llo_original>
